<compile_context>
chip_gen: v5e
topology: v5e:2x2
jax: 0.10.0
libtpu: 0.0.40
codegen_flags: <defaults>
</compile_context>

<pallas_src>
import math

import jax
import jax.numpy as jnp
import numpy as np
from jax.experimental import pallas as pl
from jax.experimental.pallas import tpu as pltpu

# ----------------------------- configuration --------------------------------
B = 2          # batch
S = 8          # sequence length
D = 32         # d_model
H = 4          # attention heads
DK = D // H    # per-head dim
DFF = 64       # feed-forward hidden dim
EPS = 1e-6

# vector-slab rows (all padded to 3*D lanes):
#   0 ln1_a | 1 ln1_b | 2 bqkv(3D) | 3 bo | 4 ln2_a | 5 ln2_b | 6 b1(DFF) | 7 b2
# weight-slab rows (bf16, 3*D lanes wide):
#   [0:D]        wqkv (D, 3D)
#   [D:2D]       wo   (D, D)
#   [2D:3D]      w1   (D, DFF)
#   [3D:3D+DFF]  w2   (DFF, D)


# ------------------------------- kernel --------------------------------------
def encoder_layer_kernel(x_ref, bias_ref, vecs_ref, wslab_ref, out_ref, ctx_ref):
    f32 = jnp.float32
    bf16 = jnp.bfloat16

    n_rows = x_ref.shape[0]          # b_blk * S
    b_blk = n_rows // S

    # -------- unpack parameter slabs (static, aligned slices) --------
    ln1a = vecs_ref[0:1, 0:D]
    ln1b = vecs_ref[1:2, 0:D]
    bqkv = vecs_ref[2:3, 0:3 * D]
    bo = vecs_ref[3:4, 0:D]
    ln2a = vecs_ref[4:5, 0:D]
    ln2b = vecs_ref[5:6, 0:D]
    b1 = vecs_ref[6:7, 0:DFF]
    b2 = vecs_ref[7:8, 0:D]

    wqkv = wslab_ref[0:D, 0:3 * D]            # bf16 (D, 3D), scale folded into Q cols
    wo = wslab_ref[D:2 * D, 0:D]              # bf16 (D, D)
    w1 = wslab_ref[2 * D:3 * D, 0:DFF]        # bf16 (D, DFF)
    w2 = wslab_ref[3 * D:3 * D + DFF, 0:D]    # bf16 (DFF, D)

    x = x_ref[...].astype(f32)                # (N, D)

    def layer_norm(v, a, b):
        mu = jnp.mean(v, axis=-1, keepdims=True)
        # unbiased std, matching torch.Tensor.std default in the reference LayerNorm
        var = jnp.sum((v - mu) ** 2, axis=-1, keepdims=True) / (v.shape[-1] - 1)
        inv = pl.reciprocal(jnp.sqrt(var) + EPS, approx=True)   # EUP slot (free-ish)
        return a * (v - mu) * inv + b

    # ---------------- sublayer 0: multi-head self-attention ----------------
    xn = layer_norm(x, ln1a, ln1b)
    # fused QKV projection; 1/sqrt(d_k) already folded into the Q columns.
    qkv = jnp.dot(xn.astype(bf16), wqkv, preferred_element_type=f32) + bqkv   # (N, 3D)

    # per-(batch, head) scores, sublane-stacked into one slab
    sc_blocks = []
    for b in range(b_blk):                       # static unroll over batch rows
        rows = slice(b * S, (b + 1) * S)
        q_b = qkv[rows, 0:D].astype(bf16)
        k_b = qkv[rows, D:2 * D].astype(bf16)
        for h in range(H):                       # static unroll over heads
            cols = slice(h * DK, (h + 1) * DK)
            sc_blocks.append(jax.lax.dot_general(
                q_b[:, cols], k_b[:, cols], (((1,), (1,)), ((), ())),
                preferred_element_type=f32))     # (S, S)
    sc = jnp.concatenate(sc_blocks, axis=0) + bias_ref[...]     # (b_blk*H*S, S)

    # one softmax over the whole stacked slab (bias already added)
    m = jnp.max(sc, axis=-1, keepdims=True)
    e = jnp.exp(sc - m)
    denom = jnp.sum(e, axis=-1, keepdims=True)
    p = (e * pl.reciprocal(denom, approx=True)).astype(bf16)    # (b_blk*H*S, S)

    # per-(batch, head) p @ V written into the ctx scratch at lane offset h*DK
    for b in range(b_blk):
        rows = slice(b * S, (b + 1) * S)
        for h in range(H):
            blk = slice((b * H + h) * S, (b * H + h + 1) * S)
            v_bh = qkv[rows, 2 * D + h * DK: 2 * D + (h + 1) * DK].astype(bf16)
            ctx_ref[rows, h * DK:(h + 1) * DK] = jnp.dot(
                p[blk, :], v_bh, preferred_element_type=f32)    # (S, DK)

    # ONE output-projection matmul over the whole block
    attn = jnp.dot(ctx_ref[...].astype(bf16), wo, preferred_element_type=f32)
    x1 = x + attn + bo                           # residual (dropout = identity)

    # ---------------- sublayer 1: position-wise feed-forward ----------------
    xn2 = layer_norm(x1, ln2a, ln2b)
    hdn = jnp.maximum(
        jnp.dot(xn2.astype(bf16), w1, preferred_element_type=f32) + b1, 0.0)
    ff = jnp.dot(hdn.astype(bf16), w2, preferred_element_type=f32) + b2

    out_ref[...] = (x1 + ff).astype(out_ref.dtype)


# --------------------------- parameter preparation ----------------------------
def prepare_params(params):
    """Fuse Q/K/V, fold the 1/sqrt(d_k) scale into Wq/bq, cast weights to bf16."""
    (ln1a, ln1b, wq, bq, wk, bk, wv, bv, wo, bo, ln2a, ln2b, w1, b1, w2, b2) = params
    scale = 1.0 / math.sqrt(DK)
    wqkv = jnp.concatenate([wq * scale, wk, wv], axis=1).astype(jnp.bfloat16)
    bqkv = jnp.concatenate([bq * scale, bk, bv], axis=1).astype(jnp.float32)
    return (ln1a, ln1b, wqkv, bqkv,
            wo.astype(jnp.bfloat16), bo,
            ln2a, ln2b,
            w1.astype(jnp.bfloat16), b1,
            w2.astype(jnp.bfloat16), b2)


def pack_params(prep):
    """Pack prepared params into one f32 vector slab + one bf16 weight slab."""
    (ln1a, ln1b, wqkv, bqkv, wo, bo, ln2a, ln2b, w1, b1, w2, b2) = prep

    vecs = jnp.zeros((8, 3 * D), jnp.float32)
    vecs = vecs.at[0:1, 0:D].set(ln1a)
    vecs = vecs.at[1:2, 0:D].set(ln1b)
    vecs = vecs.at[2:3, 0:3 * D].set(bqkv)
    vecs = vecs.at[3:4, 0:D].set(bo)
    vecs = vecs.at[4:5, 0:D].set(ln2a)
    vecs = vecs.at[5:6, 0:D].set(ln2b)
    vecs = vecs.at[6:7, 0:DFF].set(b1)
    vecs = vecs.at[7:8, 0:D].set(b2)

    # row offsets 0 / D / 2D / 3D are all multiples of 16 -> bf16 sublane-tile aligned
    wslab = jnp.zeros((3 * D + DFF, 3 * D), jnp.bfloat16)
    wslab = wslab.at[0:D, 0:3 * D].set(wqkv)
    wslab = wslab.at[D:2 * D, 0:D].set(wo)
    wslab = wslab.at[2 * D:3 * D, 0:DFF].set(w1)
    wslab = wslab.at[3 * D:3 * D + DFF, 0:D].set(w2)
    return vecs, wslab


# ------------------------------- wrapper --------------------------------------
def encoder_layer(x, src_mask, params, *, batch_tiles=1):
    # batch_tiles=1 for the single-TC v5e/v6e (extra grid steps are serial overhead);
    # batch_tiles=2 on v7x so each of the two TensorCores takes one batch element.
    Bx, Sx, Dx = x.shape
    assert Sx == S and Dx == D and Bx % batch_tiles == 0
    b_blk = Bx // batch_tiles
    n_rows_blk = b_blk * Sx

    prep = prepare_params(params)
    vecs, wslab = pack_params(prep)

    x2d = x.reshape(Bx * Sx, Dx)       # free wrapper-side reshape; rows stay D-wide

    # mask -> additive bias, precomputed wrapper-side (16 elements, free in XLA) and
    # pre-stacked to line up with the kernel's (b, h, query)-sublane-stacked score slab.
    bias = jnp.where(src_mask == 0.0, -1e9, 0.0).astype(jnp.float32)       # (B, 1, S)
    bias_stacked = jnp.broadcast_to(bias, (Bx, H * Sx, Sx)).reshape(Bx * H * Sx, Sx)

    # advisory cost estimate for the XLA scheduler
    flops = (2 * Bx * Sx * Dx * 3 * Dx            # fused QKV
             + 2 * 2 * Bx * H * Sx * Sx * DK      # scores + context
             + 2 * Bx * Sx * Dx * Dx              # output projection
             + 2 * 2 * Bx * Sx * Dx * DFF)        # FFN
    transcendentals = Bx * H * Sx * Sx + 4 * Bx * Sx
    bytes_accessed = (sum(int(np.prod(a.shape)) * a.dtype.itemsize
                          for a in (x2d, bias_stacked, vecs, wslab))
                      + int(np.prod(x2d.shape)) * x2d.dtype.itemsize)      # + output

    out2d = pl.pallas_call(
        encoder_layer_kernel,
        out_shape=jax.ShapeDtypeStruct((Bx * Sx, Dx), x.dtype),
        grid_spec=pltpu.PrefetchScalarGridSpec(
            num_scalar_prefetch=0,
            grid=(batch_tiles,),
            in_specs=[
                pl.BlockSpec((n_rows_blk, Dx), lambda i: (i, 0)),          # x rows
                pl.BlockSpec((b_blk * H * Sx, Sx), lambda i: (i, 0)),      # mask bias
                pl.BlockSpec(vecs.shape, lambda i: (0, 0)),                # f32 vec slab
                pl.BlockSpec(wslab.shape, lambda i: (0, 0)),               # bf16 W slab
            ],
            out_specs=pl.BlockSpec((n_rows_blk, Dx), lambda i: (i, 0)),
            scratch_shapes=[pltpu.VMEM((n_rows_blk, Dx), jnp.float32)],    # ctx buffer
        ),
        compiler_params=pltpu.CompilerParams(
            dimension_semantics=("parallel",)),
        cost_estimate=pl.CostEstimate(flops=int(flops),
                                      transcendentals=int(transcendentals),
                                      bytes_accessed=int(bytes_accessed)),
    )(x2d, bias_stacked, vecs, wslab)

    return out2d.reshape(Bx, Sx, Dx)


# --------------------------- pure-JAX reference --------------------------------
# Mirrors the kernel's numerics: bf16 MXU inputs, f32 accumulation, f32 elementwise.
# (Checks kernel self-consistency; known numerics delta vs the f32 torch module.)
def reference(x, src_mask, prep):
    (ln1a, ln1b, wqkv, bqkv, wo, bo, ln2a, ln2b, w1, b1, w2, b2) = prep
    bf = jnp.bfloat16
    f32 = jnp.float32
    Bx, Sx, Dx = x.shape

    def ln(v, a, b):
        mu = jnp.mean(v, axis=-1, keepdims=True)
        var = jnp.sum((v - mu) ** 2, axis=-1, keepdims=True) / (v.shape[-1] - 1)
        return a * (v - mu) / (jnp.sqrt(var) + EPS) + b

    xn = ln(x, ln1a, ln1b)
    qkv = jnp.einsum("bsd,df->bsf", xn.astype(bf), wqkv,
                     preferred_element_type=f32) + bqkv
    q = qkv[..., 0 * Dx:1 * Dx].reshape(Bx, Sx, H, DK).transpose(0, 2, 1, 3)
    k = qkv[..., 1 * Dx:2 * Dx].reshape(Bx, Sx, H, DK).transpose(0, 2, 1, 3)
    v = qkv[..., 2 * Dx:3 * Dx].reshape(Bx, Sx, H, DK).transpose(0, 2, 1, 3)

    sc = jnp.einsum("bhqd,bhkd->bhqk", q.astype(bf), k.astype(bf),
                    preferred_element_type=f32)      # scale pre-folded into Wq
    bias = jnp.where(src_mask == 0.0, -1e9, 0.0)[:, None, :, :]
    p = jax.nn.softmax(sc + bias, axis=-1)
    ctx = jnp.einsum("bhqk,bhkd->bhqd", p.astype(bf), v.astype(bf),
                     preferred_element_type=f32)
    attn = ctx.transpose(0, 2, 1, 3).reshape(Bx, Sx, Dx)
    x1 = x + jnp.einsum("bsd,df->bsf", attn.astype(bf), wo,
                        preferred_element_type=f32) + bo

    xn2 = ln(x1, ln2a, ln2b)
    hdn = jnp.maximum(jnp.einsum("bsd,df->bsf", xn2.astype(bf), w1,
                                 preferred_element_type=f32) + b1, 0.0)
    ff = jnp.einsum("bsf,fd->bsd", hdn.astype(bf), w2,
                    preferred_element_type=f32) + b2
    return x1 + ff


# --------------------------------- main ----------------------------------------
if __name__ == "__main__":
    key = jax.random.PRNGKey(0)
    ks = jax.random.split(key, 16)

    def w(k, shape, scale=0.05):
        return (scale * jax.random.normal(k, shape)).astype(jnp.float32)

    params = (
        jnp.ones((1, D), jnp.float32),           # ln1 a2
        jnp.zeros((1, D), jnp.float32),          # ln1 b2
        w(ks[0], (D, D)), w(ks[1], (1, D)),      # wq, bq
        w(ks[2], (D, D)), w(ks[3], (1, D)),      # wk, bk
        w(ks[4], (D, D)), w(ks[5], (1, D)),      # wv, bv
        w(ks[6], (D, D)), w(ks[7], (1, D)),      # wo, bo
        jnp.ones((1, D), jnp.float32),           # ln2 a2
        jnp.zeros((1, D), jnp.float32),          # ln2 b2
        w(ks[8], (D, DFF)), w(ks[9], (1, DFF)),   # w1, b1
        w(ks[10], (DFF, D)), w(ks[11], (1, D)),   # w2, b2
    )

    x = jax.random.normal(ks[12], (B, S, D), dtype=jnp.float32)
    src_mask = jnp.ones((B, 1, S), dtype=jnp.float32)   # all positions attendable

    out = encoder_layer(x, src_mask, params)            # batch_tiles=2 on v7x
    out = jax.block_until_ready(out)

    ref = reference(x, src_mask, prepare_params(params))
    # tolerance covers the approx reciprocals in the kernel (softmax denom AND the two
    # LayerNorms) plus bf16-matmul reduction-order differences vs the exact-divide ref.
    np.testing.assert_allclose(np.asarray(out), np.asarray(ref), rtol=5e-3, atol=5e-3)

    print("KERNEL_OK")
</pallas_src>

<mosaic_0001>
module attributes {stable_mosaic.version = 11 : i64} {
  func.func @encoder_layer_kernel(%arg0: i32, %arg1: memref<16x32xf32, #tpu.memory_space<vmem>>, %arg2: memref<64x8xf32, #tpu.memory_space<vmem>>, %arg3: memref<8x96xf32, #tpu.memory_space<vmem>>, %arg4: memref<160x96xbf16, #tpu.memory_space<vmem>>, %arg5: memref<16x32xf32, #tpu.memory_space<vmem>>, %arg6: memref<16x32xf32, #tpu.memory_space<vmem>>) attributes {dimension_semantics = [#tpu.dimension_semantics<parallel>], iteration_bounds = array<i64: 1>, scalar_prefetch = 0 : i64, scratch_operands = 1 : i64, tpu.core_type = #tpu.core_type<tc>, window_params = [{transform_indices = @transform_0, window_bounds = array<i64: 16, 32>}, {transform_indices = @transform_1, window_bounds = array<i64: 64, 8>}, {pipeline_mode = #tpu.pipeline_mode<synchronous>, transform_indices = @transform_2, window_bounds = array<i64: 8, 96>}, {pipeline_mode = #tpu.pipeline_mode<synchronous>, transform_indices = @transform_3, window_bounds = array<i64: 160, 96>}, {transform_indices = @transform_4, window_bounds = array<i64: 16, 32>}]} {
    %c0 = arith.constant 0 : index
    %c0_0 = arith.constant 0 : index
    %0 = vector.load %arg3[%c0, %c0_0] : memref<8x96xf32, #tpu.memory_space<vmem>>, vector<1x32xf32>
    %c1 = arith.constant 1 : index
    %c0_1 = arith.constant 0 : index
    %1 = vector.load %arg3[%c1, %c0_1] : memref<8x96xf32, #tpu.memory_space<vmem>>, vector<1x32xf32>
    %c2 = arith.constant 2 : index
    %c0_2 = arith.constant 0 : index
    %2 = vector.load %arg3[%c2, %c0_2] : memref<8x96xf32, #tpu.memory_space<vmem>>, vector<1x96xf32>
    %c3 = arith.constant 3 : index
    %c0_3 = arith.constant 0 : index
    %3 = vector.load %arg3[%c3, %c0_3] : memref<8x96xf32, #tpu.memory_space<vmem>>, vector<1x32xf32>
    %c4 = arith.constant 4 : index
    %c0_4 = arith.constant 0 : index
    %4 = vector.load %arg3[%c4, %c0_4] : memref<8x96xf32, #tpu.memory_space<vmem>>, vector<1x32xf32>
    %c5 = arith.constant 5 : index
    %c0_5 = arith.constant 0 : index
    %5 = vector.load %arg3[%c5, %c0_5] : memref<8x96xf32, #tpu.memory_space<vmem>>, vector<1x32xf32>
    %c6 = arith.constant 6 : index
    %c0_6 = arith.constant 0 : index
    %6 = vector.load %arg3[%c6, %c0_6] : memref<8x96xf32, #tpu.memory_space<vmem>>, vector<1x64xf32>
    %c7 = arith.constant 7 : index
    %c0_7 = arith.constant 0 : index
    %7 = vector.load %arg3[%c7, %c0_7] : memref<8x96xf32, #tpu.memory_space<vmem>>, vector<1x32xf32>
    %c0_8 = arith.constant 0 : index
    %c0_9 = arith.constant 0 : index
    %8 = vector.load %arg4[%c0_8, %c0_9] : memref<160x96xbf16, #tpu.memory_space<vmem>>, vector<32x96xbf16>
    %c32 = arith.constant 32 : index
    %c0_10 = arith.constant 0 : index
    %9 = vector.load %arg4[%c32, %c0_10] : memref<160x96xbf16, #tpu.memory_space<vmem>>, vector<32x32xbf16>
    %c64 = arith.constant 64 : index
    %c0_11 = arith.constant 0 : index
    %10 = vector.load %arg4[%c64, %c0_11] : memref<160x96xbf16, #tpu.memory_space<vmem>>, vector<32x64xbf16>
    %c96 = arith.constant 96 : index
    %c0_12 = arith.constant 0 : index
    %11 = vector.load %arg4[%c96, %c0_12] : memref<160x96xbf16, #tpu.memory_space<vmem>>, vector<64x32xbf16>
    %c0_13 = arith.constant 0 : index
    %c0_14 = arith.constant 0 : index
    %12 = vector.load %arg1[%c0_13, %c0_14] : memref<16x32xf32, #tpu.memory_space<vmem>>, vector<16x32xf32>
    %cst = arith.constant dense<0.000000e+00> : vector<16xf32>
    %13 = vector.multi_reduction <add>, %12, %cst [1] : vector<16x32xf32> to vector<16xf32>
    %14 = vector.shape_cast %13 : vector<16xf32> to vector<16x1xf32>
    %cst_15 = arith.constant 3.200000e+01 : f32
    %15 = vector.broadcast %cst_15 : f32 to vector<16x1xf32>
    %16 = arith.divf %14, %15 : vector<16x1xf32>
    %17 = vector.broadcast %16 : vector<16x1xf32> to vector<16x32xf32>
    %18 = arith.subf %12, %17 : vector<16x32xf32>
    %19 = arith.mulf %18, %18 : vector<16x32xf32>
    %cst_16 = arith.constant dense<0.000000e+00> : vector<16xf32>
    %20 = vector.multi_reduction <add>, %19, %cst_16 [1] : vector<16x32xf32> to vector<16xf32>
    %21 = vector.shape_cast %20 : vector<16xf32> to vector<16x1xf32>
    %cst_17 = arith.constant 3.100000e+01 : f32
    %22 = vector.broadcast %cst_17 : f32 to vector<16x1xf32>
    %23 = arith.divf %21, %22 : vector<16x1xf32>
    %24 = math.sqrt %23 : vector<16x1xf32>
    %cst_18 = arith.constant 9.99999997E-7 : f32
    %25 = vector.broadcast %cst_18 : f32 to vector<16x1xf32>
    %26 = arith.addf %24, %25 : vector<16x1xf32>
    %27 = tpu.reciprocal %26 {approx = true} : vector<16x1xf32> -> vector<16x1xf32>
    %28 = vector.broadcast %16 : vector<16x1xf32> to vector<16x32xf32>
    %29 = arith.subf %12, %28 : vector<16x32xf32>
    %30 = vector.broadcast %0 : vector<1x32xf32> to vector<16x32xf32>
    %31 = arith.mulf %30, %29 : vector<16x32xf32>
    %32 = vector.broadcast %27 : vector<16x1xf32> to vector<16x32xf32>
    %33 = arith.mulf %31, %32 : vector<16x32xf32>
    %34 = vector.broadcast %1 : vector<1x32xf32> to vector<16x32xf32>
    %35 = arith.addf %33, %34 : vector<16x32xf32>
    %36 = arith.truncf %35 : vector<16x32xf32> to vector<16x32xbf16>
    %cst_19 = arith.constant dense<0.000000e+00> : vector<16x96xf32>
    %37 = tpu.matmul %36, %8, %cst_19 {dimension_numbers = #tpu.dot_dimension_numbers<[1], [0], [0], [1], [0, 0, 1, 1], [], []>} : vector<16x32xbf16>, vector<32x96xbf16>, vector<16x96xf32> -> vector<16x96xf32>
    %38 = vector.broadcast %2 : vector<1x96xf32> to vector<16x96xf32>
    %39 = arith.addf %37, %38 : vector<16x96xf32>
    %40 = vector.extract_strided_slice %39 {offsets = [0, 0], sizes = [8, 32], strides = [1, 1]} : vector<16x96xf32> to vector<8x32xf32>
    %41 = arith.truncf %40 : vector<8x32xf32> to vector<8x32xbf16>
    %42 = vector.extract_strided_slice %39 {offsets = [0, 32], sizes = [8, 32], strides = [1, 1]} : vector<16x96xf32> to vector<8x32xf32>
    %43 = arith.truncf %42 : vector<8x32xf32> to vector<8x32xbf16>
    %44 = vector.extract_strided_slice %41 {offsets = [0, 0], sizes = [8, 8], strides = [1, 1]} : vector<8x32xbf16> to vector<8x8xbf16>
    %45 = vector.extract_strided_slice %43 {offsets = [0, 0], sizes = [8, 8], strides = [1, 1]} : vector<8x32xbf16> to vector<8x8xbf16>
    %cst_20 = arith.constant dense<0.000000e+00> : vector<8x8xf32>
    %46 = tpu.matmul %44, %45, %cst_20 {dimension_numbers = #tpu.dot_dimension_numbers<[1], [1], [0], [0], [0, 0, 1, 0], [], []>} : vector<8x8xbf16>, vector<8x8xbf16>, vector<8x8xf32> -> vector<8x8xf32>
    %47 = vector.extract_strided_slice %41 {offsets = [0, 8], sizes = [8, 8], strides = [1, 1]} : vector<8x32xbf16> to vector<8x8xbf16>
    %48 = vector.extract_strided_slice %43 {offsets = [0, 8], sizes = [8, 8], strides = [1, 1]} : vector<8x32xbf16> to vector<8x8xbf16>
    %cst_21 = arith.constant dense<0.000000e+00> : vector<8x8xf32>
    %49 = tpu.matmul %47, %48, %cst_21 {dimension_numbers = #tpu.dot_dimension_numbers<[1], [1], [0], [0], [0, 0, 1, 0], [], []>} : vector<8x8xbf16>, vector<8x8xbf16>, vector<8x8xf32> -> vector<8x8xf32>
    %50 = vector.extract_strided_slice %41 {offsets = [0, 16], sizes = [8, 8], strides = [1, 1]} : vector<8x32xbf16> to vector<8x8xbf16>
    %51 = vector.extract_strided_slice %43 {offsets = [0, 16], sizes = [8, 8], strides = [1, 1]} : vector<8x32xbf16> to vector<8x8xbf16>
    %cst_22 = arith.constant dense<0.000000e+00> : vector<8x8xf32>
    %52 = tpu.matmul %50, %51, %cst_22 {dimension_numbers = #tpu.dot_dimension_numbers<[1], [1], [0], [0], [0, 0, 1, 0], [], []>} : vector<8x8xbf16>, vector<8x8xbf16>, vector<8x8xf32> -> vector<8x8xf32>
    %53 = vector.extract_strided_slice %41 {offsets = [0, 24], sizes = [8, 8], strides = [1, 1]} : vector<8x32xbf16> to vector<8x8xbf16>
    %54 = vector.extract_strided_slice %43 {offsets = [0, 24], sizes = [8, 8], strides = [1, 1]} : vector<8x32xbf16> to vector<8x8xbf16>
    %cst_23 = arith.constant dense<0.000000e+00> : vector<8x8xf32>
    %55 = tpu.matmul %53, %54, %cst_23 {dimension_numbers = #tpu.dot_dimension_numbers<[1], [1], [0], [0], [0, 0, 1, 0], [], []>} : vector<8x8xbf16>, vector<8x8xbf16>, vector<8x8xf32> -> vector<8x8xf32>
    %56 = vector.extract_strided_slice %39 {offsets = [8, 0], sizes = [8, 32], strides = [1, 1]} : vector<16x96xf32> to vector<8x32xf32>
    %57 = arith.truncf %56 : vector<8x32xf32> to vector<8x32xbf16>
    %58 = vector.extract_strided_slice %39 {offsets = [8, 32], sizes = [8, 32], strides = [1, 1]} : vector<16x96xf32> to vector<8x32xf32>
    %59 = arith.truncf %58 : vector<8x32xf32> to vector<8x32xbf16>
    %60 = vector.extract_strided_slice %57 {offsets = [0, 0], sizes = [8, 8], strides = [1, 1]} : vector<8x32xbf16> to vector<8x8xbf16>
    %61 = vector.extract_strided_slice %59 {offsets = [0, 0], sizes = [8, 8], strides = [1, 1]} : vector<8x32xbf16> to vector<8x8xbf16>
    %cst_24 = arith.constant dense<0.000000e+00> : vector<8x8xf32>
    %62 = tpu.matmul %60, %61, %cst_24 {dimension_numbers = #tpu.dot_dimension_numbers<[1], [1], [0], [0], [0, 0, 1, 0], [], []>} : vector<8x8xbf16>, vector<8x8xbf16>, vector<8x8xf32> -> vector<8x8xf32>
    %63 = vector.extract_strided_slice %57 {offsets = [0, 8], sizes = [8, 8], strides = [1, 1]} : vector<8x32xbf16> to vector<8x8xbf16>
    %64 = vector.extract_strided_slice %59 {offsets = [0, 8], sizes = [8, 8], strides = [1, 1]} : vector<8x32xbf16> to vector<8x8xbf16>
    %cst_25 = arith.constant dense<0.000000e+00> : vector<8x8xf32>
    %65 = tpu.matmul %63, %64, %cst_25 {dimension_numbers = #tpu.dot_dimension_numbers<[1], [1], [0], [0], [0, 0, 1, 0], [], []>} : vector<8x8xbf16>, vector<8x8xbf16>, vector<8x8xf32> -> vector<8x8xf32>
    %66 = vector.extract_strided_slice %57 {offsets = [0, 16], sizes = [8, 8], strides = [1, 1]} : vector<8x32xbf16> to vector<8x8xbf16>
    %67 = vector.extract_strided_slice %59 {offsets = [0, 16], sizes = [8, 8], strides = [1, 1]} : vector<8x32xbf16> to vector<8x8xbf16>
    %cst_26 = arith.constant dense<0.000000e+00> : vector<8x8xf32>
    %68 = tpu.matmul %66, %67, %cst_26 {dimension_numbers = #tpu.dot_dimension_numbers<[1], [1], [0], [0], [0, 0, 1, 0], [], []>} : vector<8x8xbf16>, vector<8x8xbf16>, vector<8x8xf32> -> vector<8x8xf32>
    %69 = vector.extract_strided_slice %57 {offsets = [0, 24], sizes = [8, 8], strides = [1, 1]} : vector<8x32xbf16> to vector<8x8xbf16>
    %70 = vector.extract_strided_slice %59 {offsets = [0, 24], sizes = [8, 8], strides = [1, 1]} : vector<8x32xbf16> to vector<8x8xbf16>
    %cst_27 = arith.constant dense<0.000000e+00> : vector<8x8xf32>
    %71 = tpu.matmul %69, %70, %cst_27 {dimension_numbers = #tpu.dot_dimension_numbers<[1], [1], [0], [0], [0, 0, 1, 0], [], []>} : vector<8x8xbf16>, vector<8x8xbf16>, vector<8x8xf32> -> vector<8x8xf32>
    %72 = tpu.concatenate %46, %49, %52, %55, %62, %65, %68, %71 in 0 : vector<8x8xf32>, vector<8x8xf32>, vector<8x8xf32>, vector<8x8xf32>, vector<8x8xf32>, vector<8x8xf32>, vector<8x8xf32>, vector<8x8xf32> -> vector<64x8xf32>
    %c0_28 = arith.constant 0 : index
    %c0_29 = arith.constant 0 : index
    %73 = vector.load %arg2[%c0_28, %c0_29] : memref<64x8xf32, #tpu.memory_space<vmem>>, vector<64x8xf32>
    %74 = arith.addf %72, %73 : vector<64x8xf32>
    %cst_30 = arith.constant dense<0xFF800000> : vector<64xf32>
    %75 = vector.multi_reduction <maximumf>, %74, %cst_30 [1] : vector<64x8xf32> to vector<64xf32>
    %76 = vector.shape_cast %75 : vector<64xf32> to vector<64x1xf32>
    %77 = vector.broadcast %76 : vector<64x1xf32> to vector<64x8xf32>
    %78 = arith.subf %74, %77 : vector<64x8xf32>
    %79 = math.exp %78 : vector<64x8xf32>
    %cst_31 = arith.constant dense<0.000000e+00> : vector<64xf32>
    %80 = vector.multi_reduction <add>, %79, %cst_31 [1] : vector<64x8xf32> to vector<64xf32>
    %81 = vector.shape_cast %80 : vector<64xf32> to vector<64x1xf32>
    %82 = tpu.reciprocal %81 {approx = true} : vector<64x1xf32> -> vector<64x1xf32>
    %83 = vector.broadcast %82 : vector<64x1xf32> to vector<64x8xf32>
    %84 = arith.mulf %79, %83 : vector<64x8xf32>
    %85 = arith.truncf %84 : vector<64x8xf32> to vector<64x8xbf16>
    %86 = vector.extract_strided_slice %39 {offsets = [0, 64], sizes = [8, 8], strides = [1, 1]} : vector<16x96xf32> to vector<8x8xf32>
    %87 = arith.truncf %86 : vector<8x8xf32> to vector<8x8xbf16>
    %88 = vector.extract_strided_slice %85 {offsets = [0, 0], sizes = [8, 8], strides = [1, 1]} : vector<64x8xbf16> to vector<8x8xbf16>
    %cst_32 = arith.constant dense<0.000000e+00> : vector<8x8xf32>
    %89 = tpu.matmul %88, %87, %cst_32 {dimension_numbers = #tpu.dot_dimension_numbers<[1], [0], [0], [1], [0, 0, 1, 1], [], []>} : vector<8x8xbf16>, vector<8x8xbf16>, vector<8x8xf32> -> vector<8x8xf32>
    %c0_33 = arith.constant 0 : index
    %c0_34 = arith.constant 0 : index
    %90 = vector.load %arg6[%c0_33, %c0_34] : memref<16x32xf32, #tpu.memory_space<vmem>>, vector<8x8xf32>
    tpu.vector_store %arg6[%c0_33, %c0_34], %89 {strides = array<i32>} : memref<16x32xf32, #tpu.memory_space<vmem>>, vector<8x8xf32>,
    %91 = vector.extract_strided_slice %39 {offsets = [0, 72], sizes = [8, 8], strides = [1, 1]} : vector<16x96xf32> to vector<8x8xf32>
    %92 = arith.truncf %91 : vector<8x8xf32> to vector<8x8xbf16>
    %93 = vector.extract_strided_slice %85 {offsets = [8, 0], sizes = [8, 8], strides = [1, 1]} : vector<64x8xbf16> to vector<8x8xbf16>
    %cst_35 = arith.constant dense<0.000000e+00> : vector<8x8xf32>
    %94 = tpu.matmul %93, %92, %cst_35 {dimension_numbers = #tpu.dot_dimension_numbers<[1], [0], [0], [1], [0, 0, 1, 1], [], []>} : vector<8x8xbf16>, vector<8x8xbf16>, vector<8x8xf32> -> vector<8x8xf32>
    %c0_36 = arith.constant 0 : index
    %c8 = arith.constant 8 : index
    %95 = vector.load %arg6[%c0_36, %c8] : memref<16x32xf32, #tpu.memory_space<vmem>>, vector<8x8xf32>
    tpu.vector_store %arg6[%c0_36, %c8], %94 {strides = array<i32>} : memref<16x32xf32, #tpu.memory_space<vmem>>, vector<8x8xf32>,
    %96 = vector.extract_strided_slice %39 {offsets = [0, 80], sizes = [8, 8], strides = [1, 1]} : vector<16x96xf32> to vector<8x8xf32>
    %97 = arith.truncf %96 : vector<8x8xf32> to vector<8x8xbf16>
    %98 = vector.extract_strided_slice %85 {offsets = [16, 0], sizes = [8, 8], strides = [1, 1]} : vector<64x8xbf16> to vector<8x8xbf16>
    %cst_37 = arith.constant dense<0.000000e+00> : vector<8x8xf32>
    %99 = tpu.matmul %98, %97, %cst_37 {dimension_numbers = #tpu.dot_dimension_numbers<[1], [0], [0], [1], [0, 0, 1, 1], [], []>} : vector<8x8xbf16>, vector<8x8xbf16>, vector<8x8xf32> -> vector<8x8xf32>
    %c0_38 = arith.constant 0 : index
    %c16 = arith.constant 16 : index
    %100 = vector.load %arg6[%c0_38, %c16] : memref<16x32xf32, #tpu.memory_space<vmem>>, vector<8x8xf32>
    tpu.vector_store %arg6[%c0_38, %c16], %99 {strides = array<i32>} : memref<16x32xf32, #tpu.memory_space<vmem>>, vector<8x8xf32>,
    %101 = vector.extract_strided_slice %39 {offsets = [0, 88], sizes = [8, 8], strides = [1, 1]} : vector<16x96xf32> to vector<8x8xf32>
    %102 = arith.truncf %101 : vector<8x8xf32> to vector<8x8xbf16>
    %103 = vector.extract_strided_slice %85 {offsets = [24, 0], sizes = [8, 8], strides = [1, 1]} : vector<64x8xbf16> to vector<8x8xbf16>
    %cst_39 = arith.constant dense<0.000000e+00> : vector<8x8xf32>
    %104 = tpu.matmul %103, %102, %cst_39 {dimension_numbers = #tpu.dot_dimension_numbers<[1], [0], [0], [1], [0, 0, 1, 1], [], []>} : vector<8x8xbf16>, vector<8x8xbf16>, vector<8x8xf32> -> vector<8x8xf32>
    %c0_40 = arith.constant 0 : index
    %c24 = arith.constant 24 : index
    %105 = vector.load %arg6[%c0_40, %c24] : memref<16x32xf32, #tpu.memory_space<vmem>>, vector<8x8xf32>
    tpu.vector_store %arg6[%c0_40, %c24], %104 {strides = array<i32>} : memref<16x32xf32, #tpu.memory_space<vmem>>, vector<8x8xf32>,
    %106 = vector.extract_strided_slice %39 {offsets = [8, 64], sizes = [8, 8], strides = [1, 1]} : vector<16x96xf32> to vector<8x8xf32>
    %107 = arith.truncf %106 : vector<8x8xf32> to vector<8x8xbf16>
    %108 = vector.extract_strided_slice %85 {offsets = [32, 0], sizes = [8, 8], strides = [1, 1]} : vector<64x8xbf16> to vector<8x8xbf16>
    %cst_41 = arith.constant dense<0.000000e+00> : vector<8x8xf32>
    %109 = tpu.matmul %108, %107, %cst_41 {dimension_numbers = #tpu.dot_dimension_numbers<[1], [0], [0], [1], [0, 0, 1, 1], [], []>} : vector<8x8xbf16>, vector<8x8xbf16>, vector<8x8xf32> -> vector<8x8xf32>
    %c8_42 = arith.constant 8 : index
    %c0_43 = arith.constant 0 : index
    %110 = vector.load %arg6[%c8_42, %c0_43] : memref<16x32xf32, #tpu.memory_space<vmem>>, vector<8x8xf32>
    tpu.vector_store %arg6[%c8_42, %c0_43], %109 {strides = array<i32>} : memref<16x32xf32, #tpu.memory_space<vmem>>, vector<8x8xf32>,
    %111 = vector.extract_strided_slice %39 {offsets = [8, 72], sizes = [8, 8], strides = [1, 1]} : vector<16x96xf32> to vector<8x8xf32>
    %112 = arith.truncf %111 : vector<8x8xf32> to vector<8x8xbf16>
    %113 = vector.extract_strided_slice %85 {offsets = [40, 0], sizes = [8, 8], strides = [1, 1]} : vector<64x8xbf16> to vector<8x8xbf16>
    %cst_44 = arith.constant dense<0.000000e+00> : vector<8x8xf32>
    %114 = tpu.matmul %113, %112, %cst_44 {dimension_numbers = #tpu.dot_dimension_numbers<[1], [0], [0], [1], [0, 0, 1, 1], [], []>} : vector<8x8xbf16>, vector<8x8xbf16>, vector<8x8xf32> -> vector<8x8xf32>
    %c8_45 = arith.constant 8 : index
    %c8_46 = arith.constant 8 : index
    %115 = vector.load %arg6[%c8_45, %c8_46] : memref<16x32xf32, #tpu.memory_space<vmem>>, vector<8x8xf32>
    tpu.vector_store %arg6[%c8_45, %c8_46], %114 {strides = array<i32>} : memref<16x32xf32, #tpu.memory_space<vmem>>, vector<8x8xf32>,
    %116 = vector.extract_strided_slice %39 {offsets = [8, 80], sizes = [8, 8], strides = [1, 1]} : vector<16x96xf32> to vector<8x8xf32>
    %117 = arith.truncf %116 : vector<8x8xf32> to vector<8x8xbf16>
    %118 = vector.extract_strided_slice %85 {offsets = [48, 0], sizes = [8, 8], strides = [1, 1]} : vector<64x8xbf16> to vector<8x8xbf16>
    %cst_47 = arith.constant dense<0.000000e+00> : vector<8x8xf32>
    %119 = tpu.matmul %118, %117, %cst_47 {dimension_numbers = #tpu.dot_dimension_numbers<[1], [0], [0], [1], [0, 0, 1, 1], [], []>} : vector<8x8xbf16>, vector<8x8xbf16>, vector<8x8xf32> -> vector<8x8xf32>
    %c8_48 = arith.constant 8 : index
    %c16_49 = arith.constant 16 : index
    %120 = vector.load %arg6[%c8_48, %c16_49] : memref<16x32xf32, #tpu.memory_space<vmem>>, vector<8x8xf32>
    tpu.vector_store %arg6[%c8_48, %c16_49], %119 {strides = array<i32>} : memref<16x32xf32, #tpu.memory_space<vmem>>, vector<8x8xf32>,
    %121 = vector.extract_strided_slice %39 {offsets = [8, 88], sizes = [8, 8], strides = [1, 1]} : vector<16x96xf32> to vector<8x8xf32>
    %122 = arith.truncf %121 : vector<8x8xf32> to vector<8x8xbf16>
    %123 = vector.extract_strided_slice %85 {offsets = [56, 0], sizes = [8, 8], strides = [1, 1]} : vector<64x8xbf16> to vector<8x8xbf16>
    %cst_50 = arith.constant dense<0.000000e+00> : vector<8x8xf32>
    %124 = tpu.matmul %123, %122, %cst_50 {dimension_numbers = #tpu.dot_dimension_numbers<[1], [0], [0], [1], [0, 0, 1, 1], [], []>} : vector<8x8xbf16>, vector<8x8xbf16>, vector<8x8xf32> -> vector<8x8xf32>
    %c8_51 = arith.constant 8 : index
    %c24_52 = arith.constant 24 : index
    %125 = vector.load %arg6[%c8_51, %c24_52] : memref<16x32xf32, #tpu.memory_space<vmem>>, vector<8x8xf32>
    tpu.vector_store %arg6[%c8_51, %c24_52], %124 {strides = array<i32>} : memref<16x32xf32, #tpu.memory_space<vmem>>, vector<8x8xf32>,
    %c0_53 = arith.constant 0 : index
    %c0_54 = arith.constant 0 : index
    %126 = vector.load %arg6[%c0_53, %c0_54] : memref<16x32xf32, #tpu.memory_space<vmem>>, vector<16x32xf32>
    %127 = arith.truncf %126 : vector<16x32xf32> to vector<16x32xbf16>
    %cst_55 = arith.constant dense<0.000000e+00> : vector<16x32xf32>
    %128 = tpu.matmul %127, %9, %cst_55 {dimension_numbers = #tpu.dot_dimension_numbers<[1], [0], [0], [1], [0, 0, 1, 1], [], []>} : vector<16x32xbf16>, vector<32x32xbf16>, vector<16x32xf32> -> vector<16x32xf32>
    %129 = arith.addf %12, %128 : vector<16x32xf32>
    %130 = vector.broadcast %3 : vector<1x32xf32> to vector<16x32xf32>
    %131 = arith.addf %129, %130 : vector<16x32xf32>
    %cst_56 = arith.constant dense<0.000000e+00> : vector<16xf32>
    %132 = vector.multi_reduction <add>, %131, %cst_56 [1] : vector<16x32xf32> to vector<16xf32>
    %133 = vector.shape_cast %132 : vector<16xf32> to vector<16x1xf32>
    %cst_57 = arith.constant 3.200000e+01 : f32
    %134 = vector.broadcast %cst_57 : f32 to vector<16x1xf32>
    %135 = arith.divf %133, %134 : vector<16x1xf32>
    %136 = vector.broadcast %135 : vector<16x1xf32> to vector<16x32xf32>
    %137 = arith.subf %131, %136 : vector<16x32xf32>
    %138 = arith.mulf %137, %137 : vector<16x32xf32>
    %cst_58 = arith.constant dense<0.000000e+00> : vector<16xf32>
    %139 = vector.multi_reduction <add>, %138, %cst_58 [1] : vector<16x32xf32> to vector<16xf32>
    %140 = vector.shape_cast %139 : vector<16xf32> to vector<16x1xf32>
    %cst_59 = arith.constant 3.100000e+01 : f32
    %141 = vector.broadcast %cst_59 : f32 to vector<16x1xf32>
    %142 = arith.divf %140, %141 : vector<16x1xf32>
    %143 = math.sqrt %142 : vector<16x1xf32>
    %cst_60 = arith.constant 9.99999997E-7 : f32
    %144 = vector.broadcast %cst_60 : f32 to vector<16x1xf32>
    %145 = arith.addf %143, %144 : vector<16x1xf32>
    %146 = tpu.reciprocal %145 {approx = true} : vector<16x1xf32> -> vector<16x1xf32>
    %147 = vector.broadcast %135 : vector<16x1xf32> to vector<16x32xf32>
    %148 = arith.subf %131, %147 : vector<16x32xf32>
    %149 = vector.broadcast %4 : vector<1x32xf32> to vector<16x32xf32>
    %150 = arith.mulf %149, %148 : vector<16x32xf32>
    %151 = vector.broadcast %146 : vector<16x1xf32> to vector<16x32xf32>
    %152 = arith.mulf %150, %151 : vector<16x32xf32>
    %153 = vector.broadcast %5 : vector<1x32xf32> to vector<16x32xf32>
    %154 = arith.addf %152, %153 : vector<16x32xf32>
    %155 = arith.truncf %154 : vector<16x32xf32> to vector<16x32xbf16>
    %cst_61 = arith.constant dense<0.000000e+00> : vector<16x64xf32>
    %156 = tpu.matmul %155, %10, %cst_61 {dimension_numbers = #tpu.dot_dimension_numbers<[1], [0], [0], [1], [0, 0, 1, 1], [], []>} : vector<16x32xbf16>, vector<32x64xbf16>, vector<16x64xf32> -> vector<16x64xf32>
    %157 = vector.broadcast %6 : vector<1x64xf32> to vector<16x64xf32>
    %158 = arith.addf %156, %157 : vector<16x64xf32>
    %cst_62 = arith.constant 0.000000e+00 : f32
    %159 = vector.broadcast %cst_62 : f32 to vector<16x64xf32>
    %160 = arith.maximumf %158, %159 : vector<16x64xf32>
    %161 = arith.truncf %160 : vector<16x64xf32> to vector<16x64xbf16>
    %cst_63 = arith.constant dense<0.000000e+00> : vector<16x32xf32>
    %162 = tpu.matmul %161, %11, %cst_63 {dimension_numbers = #tpu.dot_dimension_numbers<[1], [0], [0], [1], [0, 0, 1, 1], [], []>} : vector<16x64xbf16>, vector<64x32xbf16>, vector<16x32xf32> -> vector<16x32xf32>
    %163 = vector.broadcast %7 : vector<1x32xf32> to vector<16x32xf32>
    %164 = arith.addf %162, %163 : vector<16x32xf32>
    %165 = arith.addf %131, %164 : vector<16x32xf32>
    %c0_64 = arith.constant 0 : index
    %c0_65 = arith.constant 0 : index
    %166 = vector.load %arg5[%c0_64, %c0_65] : memref<16x32xf32, #tpu.memory_space<vmem>>, vector<16x32xf32>
    tpu.vector_store %arg5[%c0_64, %c0_65], %165 {strides = array<i32>} : memref<16x32xf32, #tpu.memory_space<vmem>>, vector<16x32xf32>,
    return
  }
  func.func @transform_0(%arg0: i32) -> (i32, i32) {
    %c0_i32 = arith.constant 0 : i32
    %c0_i32_0 = arith.constant 0 : i32
    return %arg0, %c0_i32 : i32, i32
  }
  func.func @transform_1(%arg0: i32) -> (i32, i32) {
    %c0_i32 = arith.constant 0 : i32
    %c0_i32_0 = arith.constant 0 : i32
    return %arg0, %c0_i32 : i32, i32
  }
  func.func @transform_2(%arg0: i32) -> (i32, i32) {
    %c0_i32 = arith.constant 0 : i32
    %c0_i32_0 = arith.constant 0 : i32
    %c0_i32_1 = arith.constant 0 : i32
    return %c0_i32, %c0_i32_0 : i32, i32
  }
  func.func @transform_3(%arg0: i32) -> (i32, i32) {
    %c0_i32 = arith.constant 0 : i32
    %c0_i32_0 = arith.constant 0 : i32
    %c0_i32_1 = arith.constant 0 : i32
    return %c0_i32, %c0_i32_0 : i32, i32
  }
  func.func @transform_4(%arg0: i32) -> (i32, i32) {
    %c0_i32 = arith.constant 0 : i32
    %c0_i32_0 = arith.constant 0 : i32
    return %arg0, %c0_i32 : i32, i32
  }
}

</mosaic_0001>

<llo_original>
// kernel: tpu_custom_call.1
$region0: #{tpu_custom_call.1}
  #allocation0 [shape = 'u32[]', space=smem, size = 0x4, offset = 0x4, fixed_abs, tag = 'smem constant byte address 0x4 - core index']
  #allocation1 [shape = 'u32[72,128]{1,0:T(1,128)}', space=vmem, size = 0x9000, scoped, tag = 'internal scratch']
  #allocation2 [shape = 'f32[16,32]{1,0:T(8,128)}', space=vmem, size = 0x2000, scoped, tag = 'scratch operand']
  %s0 = inlined_call_operand.vmem [shape: f32[16,32], index: 0, kind: input, shape index: {}]
  %s1 = inlined_call_operand.vmem [shape: f32[64,8], index: 1, kind: input, shape index: {}]
  %s2 = inlined_call_operand.vmem [shape: f32[8,96], index: 2, kind: input, shape index: {}]
  %s3 = inlined_call_operand.hbm [shape: bf16[160,96], index: 3, kind: input, shape index: {}]
  %s4 = inlined_call_operand.hbm [shape: f32[16,32], index: 4, kind: output, shape index: {}]
  %s5 = sld [smem:[#allocation0]]
  $region30: #{tpu_custom_call.1} parent=0
    _
  %s7 = ssub.s32 1, %s5
  %s8 = scalar_select 0, %s7, %s5
  $region1: #{tpu_custom_call.1} parent=0
    #allocation3 [shape = 'u8[40960]{0}', space=vmem, size = 0xa000, scoped, tag = 'input window, operand 3, single buffered']
    #allocation4 [shape = 's32[1]{0}', space=sflag, size = 0x4, scoped, tag = 'scoped memory for tpu_custom_call.1']
    #allocation5 [shape = 's32[1]{0}', space=sflag, size = 0x4, scoped, tag = 'scoped memory for tpu_custom_call.1']
    #allocation6 [shape = 'u8[8192]{0}', space=vmem, size = 0x2000, scoped, tag = 'output window, operand 0, single buffered']
    %9 = vsyncpa [#allocation4], 0
    %10 = vsyncpa [#allocation5], 0
    // Predicated region
    $region2: #{tpu_custom_call.1} parent=1 // pred_check
      _
    $region3: #{tpu_custom_call.1} parent=1 // pred_check_branch
      %12 = sbr.rel (0) target = $region5
    $region4: #{tpu_custom_call.1} parent=1 // pred_region
      _
    $region5: #{tpu_custom_call.1} parent=1 // pred_fallthru
      _
    // Predicated region
    $region6: #{tpu_custom_call.1} parent=1 // pred_check
      _
    $region7: #{tpu_custom_call.1} parent=1 // pred_check_branch
      %14 = sbr.rel (0) target = $region9
    $region8: #{tpu_custom_call.1} parent=1 // pred_region
      _
    $region9: #{tpu_custom_call.1} parent=1 // pred_fallthru
      _
    // Predicated region
    $region10: #{tpu_custom_call.1} parent=1 // pred_check
      _
    $region11: #{tpu_custom_call.1} parent=1 // pred_check_branch
      %16 = sbr.rel (0) target = $region13
    $region12: #{tpu_custom_call.1} parent=1 // pred_region
      _
    $region13: #{tpu_custom_call.1} parent=1 // pred_fallthru
      _
    // Predicated region
    $region14: #{tpu_custom_call.1} parent=1 // pred_check
      _
    $region15: #{tpu_custom_call.1} parent=1 // pred_check_branch
      %18 = sbr.rel (0) target = $region17
    $region16: #{tpu_custom_call.1} parent=1 // pred_region
      %20 = vsyncadd [#allocation4], 0
      %s21 = sshll.u32 %s3, 4
      %s22 = int_to_ptr.hbm [resolvable:$true] %s21
      %s23 = sshll.u32 [#allocation3], 4
      %s24 = int_to_ptr.vmem [resolvable:$true] %s23
      %29 = dma.hbm_to_vmem [thread:$0]  %s22, 1280, %s24, [#allocation4], 64, 64, 4
    $region17: #{tpu_custom_call.1} parent=1 // pred_fallthru
      _
    // Predicated region
    $region18: #{tpu_custom_call.1} parent=1 // pred_check
      _
    $region19: #{tpu_custom_call.1} parent=1 // pred_check_branch
      %31 = sbr.rel (0) target = $region21
    $region20: #{tpu_custom_call.1} parent=1 // pred_region
      %33 = dma.done [#allocation4], 1280
    $region21: #{tpu_custom_call.1} parent=1 // pred_fallthru
      _
    %v35 = vld [vmem:[%s2] sm:$0x1]
    %v36 = vld [vmem:[%s2 + $0x1] sm:$0x1]
    %v37 = vld [vmem:[%s2 + $0x2] sm:$0x1]
    %v38 = vld [vmem:[%s2 + $0x3] sm:$0x1]
    %v39 = vld [vmem:[%s2 + $0x4] sm:$0x1]
    %v40 = vld [vmem:[%s2 + $0x5] sm:$0x1]
    %v41 = vld [vmem:[%s2 + $0x6] sm:$0x1]
    %v42 = vld [vmem:[%s2 + $0x7] sm:$0x1]
    %v43 = vld [vmem:[#allocation3] sm:$0xf]
    %v44 = vld [vmem:[#allocation3 + $0x4] sm:$0xf]
    %v45 = vld [vmem:[#allocation3 + $0x8] sm:$0xf]
    %v46 = vld [vmem:[#allocation3 + $0xc] sm:$0xf]
    %v47 = vld [vmem:[#allocation3 + $0x10] sm:$0xf]
    %v48 = vld [vmem:[#allocation3 + $0x14] sm:$0xf]
    %v49 = vld [vmem:[#allocation3 + $0x18] sm:$0xf]
    %v50 = vld [vmem:[#allocation3 + $0x1c] sm:$0xf]
    %v51 = vld [vmem:[#allocation3 + $0x20] sm:$0xf]
    %v52 = vld [vmem:[#allocation3 + $0x24] sm:$0xf]
    %v53 = vld [vmem:[#allocation3 + $0x28] sm:$0xf]
    %v54 = vld [vmem:[#allocation3 + $0x2c] sm:$0xf]
    %v55 = vld [vmem:[#allocation3 + $0x30] sm:$0xf]
    %v56 = vld [vmem:[#allocation3 + $0x34] sm:$0xf]
    %v57 = vld [vmem:[#allocation3 + $0x38] sm:$0xf]
    %v58 = vld [vmem:[#allocation3 + $0x3c] sm:$0xf]
    %v59 = vld [vmem:[#allocation3 + $0x40] sm:$0xf]
    %v60 = vld [vmem:[#allocation3 + $0x44] sm:$0xf]
    %v61 = vld [vmem:[#allocation3 + $0x48] sm:$0xf]
    %v62 = vld [vmem:[#allocation3 + $0x4c] sm:$0xf]
    %v63 = vld [vmem:[%s0] sm:$0xff]
    %v64 = vld [vmem:[%s0 + $0x8] sm:$0xff]
    %vm65 = vcmask 261120
    %v66 = vsel %vm65, %v63, 0.0
    %67 = vadd.xlane.f32.xlu0 %v66
    %v68 = vpop.xlane.xlu0 %67
    %v69 = vsel %vm65, %v64, 0.0
    %70 = vadd.xlane.f32.xlu0 %v69
    %v71 = vpop.xlane.xlu0 %70
    %v72 = vrcp.pop 32.0
    %v73 = vmul.f32 32.0, %v72
    %v74 = vsub.f32 1.0, %v73
    %v75 = vmul.f32 %v72, %v74
    %v76 = vadd.f32 %v72, %v75
    %vm77 = vweird.f32 %v72
    %v78 = vsel %vm77, %v72, %v76
    %v79 = vmul.f32 %v68, %v78
    %v80 = vmul.f32 %v71, %v78
    %v81 = vsub.f32 %v63, %v79
    %v82 = vsub.f32 %v64, %v80
    %v83 = vmul.f32 %v81, %v81
    %v84 = vmul.f32 %v82, %v82
    %v85 = vsel %vm65, %v83, 0.0
    %86 = vadd.xlane.f32.xlu0 %v85
    %v87 = vpop.xlane.xlu0 %86
    %v88 = vsel %vm65, %v84, 0.0
    %89 = vadd.xlane.f32.xlu0 %v88
    %v90 = vpop.xlane.xlu0 %89
    %v91 = vrcp.pop 31.0
    %v92 = vmul.f32 31.0, %v91
    %v93 = vsub.f32 1.0, %v92
    %v94 = vmul.f32 %v91, %v93
    %v95 = vadd.f32 %v91, %v94
    %vm96 = vweird.f32 %v91
    %v97 = vsel %vm96, %v91, %v95
    %v98 = vmul.f32 %v87, %v97
    %v99 = vmul.f32 %v90, %v97
    %v100 = vrsqrt.pop %v98
    %v101 = vmul.f32 %v100, %v98
    %v102 = vmul.f32 %v101, %v100
    %v103 = vmul.f32 0.5, %v102
    %v104 = vsub.f32 1.5, %v103
    %v105 = vmul.f32 %v100, %v104
    %v106 = vmul.f32 %v98, %v105
    %vm107 = vcmp.eq.f32.partialorder %v98, inf
    %v108 = vsel %vm107, %v98, %v106
    %vm109 = vcmp.eq.f32.partialorder %v98, 0.0
    %v110 = vand.u32 %v98, 2147483648
    %v111 = vsel %vm109, %v110, %v108
    %v112 = vrsqrt.pop %v99
    %v113 = vmul.f32 %v112, %v99
    %v114 = vmul.f32 %v113, %v112
    %v115 = vmul.f32 0.5, %v114
    %v116 = vsub.f32 1.5, %v115
    %v117 = vmul.f32 %v112, %v116
    %v118 = vmul.f32 %v99, %v117
    %vm119 = vcmp.eq.f32.partialorder %v99, inf
    %v120 = vsel %vm119, %v99, %v118
    %vm121 = vcmp.eq.f32.partialorder %v99, 0.0
    %v122 = vand.u32 %v99, 2147483648
    %v123 = vsel %vm121, %v122, %v120
    %v124 = vadd.f32 %v111, 1e-06
    %v125 = vadd.f32 %v123, 1e-06
    %v126 = vrcp.pop %v124
    %v127 = vrcp.pop %v125
    %v128 = vperm.slane %v35, 0
    %v129 = vmul.f32 %v128, %v81
    %v130 = vmul.f32 %v128, %v82
    %v131 = vmul.f32 %v129, %v126
    %v132 = vmul.f32 %v130, %v127
    %v133 = vperm.slane %v36, 0
    %v134 = vadd.f32 %v131, %v133
    %v135 = vadd.f32 %v132, %v133
    %v136 = vpack.c.bf16 %v135, %v134
    %v137 = vperm.slane %v37, 0
    %v142 = vunpack.c.l.b16 %v43
    %v143 = vunpack.c.l.b16 %v44
    %v144 = vunpack.c.l.b16 %v45
    %v145 = vunpack.c.l.b16 %v46
    %v146 = vpack.c.b16 %v143, %v142
    %v147 = vpack.c.b16 %v145, %v144
    %v151 = vsel %vm65, %v136, 0
    %153 = vmatpush.bf16.msra.mxu0 0
    %154 = vmatpush.bf16.msra.mxu0 0
    %155 = vmatpush.bf16.msra.mxu0 0
    %156 = vmatpush.bf16.msra.mxu0 0
    %157 = vmatpush.bf16.msra.mxu0 0
    %158 = vmatpush.bf16.msra.mxu0 0
    %159 = vmatpush.bf16.msra.mxu0 %v147
    %160 = vmatpush.bf16.msra.mxu0 %v146
    %161 = vmatmul.bf16.gmra.mxu0 %v151
    %v162 = vpop.f32.mrf.mxu0
    %v163 = vadd.f32 %v137, %v162
    %v164 = vpop.f32.mrf.mxu0
    %v165 = vadd.f32 %v137, %v164
    %166 = vdwg.mxu0
    %v167 = vpack.c.bf16 %v163, %v163
    %v169 = vunpack.c.l.b16 %v167
    %v170 = vpack.c.b16 %v169, %v169
    %171 = vrot.lane.b32.xlu0 %v170, 96
    %v172 = vpop.permute.xlu0 %171
    %vm173 = vcmask 64512
    %v175 = vsel %vm173, %v167, 0
    %v178 = vsel %vm173, %v172, 0
    %180 = vmatpush.bf16.xpose.msra.mxu0 0
    %181 = vmatpush.bf16.xpose.msra.mxu0 0
    %182 = vmatpush.bf16.xpose.msra.mxu0 0
    %183 = vmatpush.bf16.xpose.msra.mxu0 0
    %184 = vmatpush.bf16.xpose.msra.mxu0 0
    %185 = vmatpush.bf16.xpose.msra.mxu0 0
    %186 = vmatpush.bf16.xpose.msra.mxu0 0
    %187 = vmatpush.bf16.xpose.msra.mxu0 %v178
    %188 = vmatmul.bf16.gmra.mxu0 %v175
    %v189 = vpop.f32.mrf.mxu0
    %v190 = vadd.f32 0.0, %v189
    %v191 = vpop.f32.mrf.mxu0
    %192 = vdwg.mxu0
    %193 = vrot.lane.b32.xlu0 %v170, 120
    %v194 = vpop.permute.xlu0 %193
    %195 = vrot.lane.b32.xlu0 %v170, 88
    %v196 = vpop.permute.xlu0 %195
    %v198 = vsel %vm173, %v194, 0
    %v201 = vsel %vm173, %v196, 0
    %203 = vmatpush.bf16.xpose.msra.mxu0 0
    %204 = vmatpush.bf16.xpose.msra.mxu0 0
    %205 = vmatpush.bf16.xpose.msra.mxu0 0
    %206 = vmatpush.bf16.xpose.msra.mxu0 0
    %207 = vmatpush.bf16.xpose.msra.mxu0 0
    %208 = vmatpush.bf16.xpose.msra.mxu0 0
    %209 = vmatpush.bf16.xpose.msra.mxu0 0
    %210 = vmatpush.bf16.xpose.msra.mxu0 %v201
    %211 = vmatmul.bf16.gmra.mxu0 %v198
    %v212 = vpop.f32.mrf.mxu0
    %v213 = vadd.f32 0.0, %v212
    %v214 = vpop.f32.mrf.mxu0
    %215 = vdwg.mxu0
    %216 = vrot.lane.b32.xlu0 %v170, 112
    %v217 = vpop.permute.xlu0 %216
    %218 = vrot.lane.b32.xlu0 %v170, 80
    %v219 = vpop.permute.xlu0 %218
    %v221 = vsel %vm173, %v217, 0
    %v224 = vsel %vm173, %v219, 0
    %226 = vmatpush.bf16.xpose.msra.mxu0 0
    %227 = vmatpush.bf16.xpose.msra.mxu0 0
    %228 = vmatpush.bf16.xpose.msra.mxu0 0
    %229 = vmatpush.bf16.xpose.msra.mxu0 0
    %230 = vmatpush.bf16.xpose.msra.mxu0 0
    %231 = vmatpush.bf16.xpose.msra.mxu0 0
    %232 = vmatpush.bf16.xpose.msra.mxu0 0
    %233 = vmatpush.bf16.xpose.msra.mxu0 %v224
    %234 = vmatmul.bf16.gmra.mxu0 %v221
    %v235 = vpop.f32.mrf.mxu0
    %v236 = vadd.f32 0.0, %v235
    %v237 = vpop.f32.mrf.mxu0
    %238 = vdwg.mxu0
    %239 = vrot.lane.b32.xlu0 %v170, 104
    %v240 = vpop.permute.xlu0 %239
    %241 = vrot.lane.b32.xlu0 %v170, 72
    %v242 = vpop.permute.xlu0 %241
    %v244 = vsel %vm173, %v240, 0
    %v247 = vsel %vm173, %v242, 0
    %249 = vmatpush.bf16.xpose.msra.mxu0 0
    %250 = vmatpush.bf16.xpose.msra.mxu0 0
    %251 = vmatpush.bf16.xpose.msra.mxu0 0
    %252 = vmatpush.bf16.xpose.msra.mxu0 0
    %253 = vmatpush.bf16.xpose.msra.mxu0 0
    %254 = vmatpush.bf16.xpose.msra.mxu0 0
    %255 = vmatpush.bf16.xpose.msra.mxu0 0
    %256 = vmatpush.bf16.xpose.msra.mxu0 %v247
    %257 = vmatmul.bf16.gmra.mxu0 %v244
    %v258 = vpop.f32.mrf.mxu0
    %v259 = vadd.f32 0.0, %v258
    %v260 = vpop.f32.mrf.mxu0
    %261 = vdwg.mxu0
    %v262 = vpack.c.bf16 %v165, %v165
    %v264 = vunpack.c.l.b16 %v262
    %v265 = vpack.c.b16 %v264, %v264
    %266 = vrot.lane.b32.xlu0 %v265, 96
    %v267 = vpop.permute.xlu0 %266
    %v269 = vsel %vm173, %v262, 0
    %v272 = vsel %vm173, %v267, 0
    %274 = vmatpush.bf16.xpose.msra.mxu0 0
    %275 = vmatpush.bf16.xpose.msra.mxu0 0
    %276 = vmatpush.bf16.xpose.msra.mxu0 0
    %277 = vmatpush.bf16.xpose.msra.mxu0 0
    %278 = vmatpush.bf16.xpose.msra.mxu0 0
    %279 = vmatpush.bf16.xpose.msra.mxu0 0
    %280 = vmatpush.bf16.xpose.msra.mxu0 0
    %281 = vmatpush.bf16.xpose.msra.mxu0 %v272
    %282 = vmatmul.bf16.gmra.mxu0 %v269
    %v283 = vpop.f32.mrf.mxu0
    %v284 = vadd.f32 0.0, %v283
    %v285 = vpop.f32.mrf.mxu0
    %286 = vdwg.mxu0
    %287 = vrot.lane.b32.xlu0 %v265, 120
    %v288 = vpop.permute.xlu0 %287
    %289 = vrot.lane.b32.xlu0 %v265, 88
    %v290 = vpop.permute.xlu0 %289
    %v292 = vsel %vm173, %v288, 0
    %v295 = vsel %vm173, %v290, 0
    %297 = vmatpush.bf16.xpose.msra.mxu0 0
    %298 = vmatpush.bf16.xpose.msra.mxu0 0
    %299 = vmatpush.bf16.xpose.msra.mxu0 0
    %300 = vmatpush.bf16.xpose.msra.mxu0 0
    %301 = vmatpush.bf16.xpose.msra.mxu0 0
    %302 = vmatpush.bf16.xpose.msra.mxu0 0
    %303 = vmatpush.bf16.xpose.msra.mxu0 0
    %304 = vmatpush.bf16.xpose.msra.mxu0 %v295
    %305 = vmatmul.bf16.gmra.mxu0 %v292
    %v306 = vpop.f32.mrf.mxu0
    %v307 = vadd.f32 0.0, %v306
    %v308 = vpop.f32.mrf.mxu0
    %309 = vdwg.mxu0
    %310 = vrot.lane.b32.xlu0 %v265, 112
    %v311 = vpop.permute.xlu0 %310
    %312 = vrot.lane.b32.xlu0 %v265, 80
    %v313 = vpop.permute.xlu0 %312
    %v315 = vsel %vm173, %v311, 0
    %v318 = vsel %vm173, %v313, 0
    %320 = vmatpush.bf16.xpose.msra.mxu0 0
    %321 = vmatpush.bf16.xpose.msra.mxu0 0
    %322 = vmatpush.bf16.xpose.msra.mxu0 0
    %323 = vmatpush.bf16.xpose.msra.mxu0 0
    %324 = vmatpush.bf16.xpose.msra.mxu0 0
    %325 = vmatpush.bf16.xpose.msra.mxu0 0
    %326 = vmatpush.bf16.xpose.msra.mxu0 0
    %327 = vmatpush.bf16.xpose.msra.mxu0 %v318
    %328 = vmatmul.bf16.gmra.mxu0 %v315
    %v329 = vpop.f32.mrf.mxu0
    %v330 = vadd.f32 0.0, %v329
    %v331 = vpop.f32.mrf.mxu0
    %332 = vdwg.mxu0
    %333 = vrot.lane.b32.xlu0 %v265, 104
    %v334 = vpop.permute.xlu0 %333
    %335 = vrot.lane.b32.xlu0 %v265, 72
    %v336 = vpop.permute.xlu0 %335
    %v338 = vsel %vm173, %v334, 0
    %v341 = vsel %vm173, %v336, 0
    %343 = vmatpush.bf16.xpose.msra.mxu0 0
    %344 = vmatpush.bf16.xpose.msra.mxu0 0
    %345 = vmatpush.bf16.xpose.msra.mxu0 0
    %346 = vmatpush.bf16.xpose.msra.mxu0 0
    %347 = vmatpush.bf16.xpose.msra.mxu0 0
    %348 = vmatpush.bf16.xpose.msra.mxu0 0
    %349 = vmatpush.bf16.xpose.msra.mxu0 0
    %350 = vmatpush.bf16.xpose.msra.mxu0 %v341
    %351 = vmatmul.bf16.gmra.mxu0 %v338
    %v352 = vpop.f32.mrf.mxu0
    %v353 = vadd.f32 0.0, %v352
    %v354 = vpop.f32.mrf.mxu0
    %355 = vdwg.mxu0
    %v356 = vld [vmem:[%s1] sm:$0xff]
    %v357 = vld [vmem:[%s1 + $0x8] sm:$0xff]
    %v358 = vld [vmem:[%s1 + $0x10] sm:$0xff]
    %v359 = vld [vmem:[%s1 + $0x18] sm:$0xff]
    %v360 = vld [vmem:[%s1 + $0x20] sm:$0xff]
    %v361 = vld [vmem:[%s1 + $0x28] sm:$0xff]
    %v362 = vld [vmem:[%s1 + $0x30] sm:$0xff]
    %v363 = vld [vmem:[%s1 + $0x38] sm:$0xff]
    %v364 = vadd.f32 %v190, %v356
    %v365 = vadd.f32 %v213, %v357
    %v366 = vadd.f32 %v236, %v358
    %v367 = vadd.f32 %v259, %v359
    %v368 = vadd.f32 %v284, %v360
    %v369 = vadd.f32 %v307, %v361
    %v370 = vadd.f32 %v330, %v362
    %v371 = vadd.f32 %v353, %v363
    %v372 = vsel %vm173, %v364, -inf
    %373 = vmax.xlane.f32.xlu0 %v372
    %v374 = vpop.xlane.xlu0 %373
    %v375 = vsel %vm173, %v365, -inf
    %376 = vmax.xlane.f32.xlu0 %v375
    %v377 = vpop.xlane.xlu0 %376
    %v378 = vsel %vm173, %v366, -inf
    %379 = vmax.xlane.f32.xlu0 %v378
    %v380 = vpop.xlane.xlu0 %379
    %v381 = vsel %vm173, %v367, -inf
    %382 = vmax.xlane.f32.xlu0 %v381
    %v383 = vpop.xlane.xlu0 %382
    %v384 = vsel %vm173, %v368, -inf
    %385 = vmax.xlane.f32.xlu0 %v384
    %v386 = vpop.xlane.xlu0 %385
    %v387 = vsel %vm173, %v369, -inf
    %388 = vmax.xlane.f32.xlu0 %v387
    %v389 = vpop.xlane.xlu0 %388
    %v390 = vsel %vm173, %v370, -inf
    %391 = vmax.xlane.f32.xlu0 %v390
    %v392 = vpop.xlane.xlu0 %391
    %v393 = vsel %vm173, %v371, -inf
    %394 = vmax.xlane.f32.xlu0 %v393
    %v395 = vpop.xlane.xlu0 %394
    %v396 = vsub.f32 %v364, %v374
    %v397 = vsub.f32 %v365, %v377
    %v398 = vsub.f32 %v366, %v380
    %v399 = vsub.f32 %v367, %v383
    %v400 = vsub.f32 %v368, %v386
    %v401 = vsub.f32 %v369, %v389
    %v402 = vsub.f32 %v370, %v392
    %v403 = vsub.f32 %v371, %v395
    %v404 = vmul.f32 %v396, 1.442695
    %v405 = vpow.pop %v404
    %v406 = vmul.f32 %v397, 1.442695
    %v407 = vpow.pop %v406
    %v408 = vmul.f32 %v398, 1.442695
    %v409 = vpow.pop %v408
    %v410 = vmul.f32 %v399, 1.442695
    %v411 = vpow.pop %v410
    %v412 = vmul.f32 %v400, 1.442695
    %v413 = vpow.pop %v412
    %v414 = vmul.f32 %v401, 1.442695
    %v415 = vpow.pop %v414
    %v416 = vmul.f32 %v402, 1.442695
    %v417 = vpow.pop %v416
    %v418 = vmul.f32 %v403, 1.442695
    %v419 = vpow.pop %v418
    %v420 = vsel %vm173, %v405, 0.0
    %421 = vadd.xlane.f32.xlu0 %v420
    %v422 = vpop.xlane.xlu0 %421
    %v423 = vsel %vm173, %v407, 0.0
    %424 = vadd.xlane.f32.xlu0 %v423
    %v425 = vpop.xlane.xlu0 %424
    %v426 = vsel %vm173, %v409, 0.0
    %427 = vadd.xlane.f32.xlu0 %v426
    %v428 = vpop.xlane.xlu0 %427
    %v429 = vsel %vm173, %v411, 0.0
    %430 = vadd.xlane.f32.xlu0 %v429
    %v431 = vpop.xlane.xlu0 %430
    %v432 = vsel %vm173, %v413, 0.0
    %433 = vadd.xlane.f32.xlu0 %v432
    %v434 = vpop.xlane.xlu0 %433
    %v435 = vsel %vm173, %v415, 0.0
    %436 = vadd.xlane.f32.xlu0 %v435
    %v437 = vpop.xlane.xlu0 %436
    %v438 = vsel %vm173, %v417, 0.0
    %439 = vadd.xlane.f32.xlu0 %v438
    %v440 = vpop.xlane.xlu0 %439
    %v441 = vsel %vm173, %v419, 0.0
    %442 = vadd.xlane.f32.xlu0 %v441
    %v443 = vpop.xlane.xlu0 %442
    %v444 = vrcp.pop %v422
    %v445 = vrcp.pop %v425
    %v446 = vrcp.pop %v428
    %v447 = vrcp.pop %v431
    %v448 = vrcp.pop %v434
    %v449 = vrcp.pop %v437
    %v450 = vrcp.pop %v440
    %v451 = vrcp.pop %v443
    %v452 = vmul.f32 %v405, %v444
    %v453 = vmul.f32 %v407, %v445
    %v454 = vmul.f32 %v409, %v446
    %v455 = vmul.f32 %v411, %v447
    %v456 = vmul.f32 %v413, %v448
    %v457 = vmul.f32 %v415, %v449
    %v458 = vmul.f32 %v417, %v450
    %v459 = vmul.f32 %v419, %v451
    %v460 = vpack.c.bf16 %v452, %v452
    %v461 = vpack.c.bf16 %v453, %v453
    %v462 = vpack.c.bf16 %v454, %v454
    %v463 = vpack.c.bf16 %v455, %v455
    %v464 = vpack.c.bf16 %v456, %v456
    %v465 = vpack.c.bf16 %v457, %v457
    %v466 = vpack.c.bf16 %v458, %v458
    %v467 = vpack.c.bf16 %v459, %v459
    %468 = vrot.lane.b32.xlu0 %v167, 64
    %v469 = vpop.permute.xlu0 %468
    %v471 = vsel %vm173, %v460, 0
    %vm473 = vcmask 1043456
    %v475 = vsel %vm473, %v469, 0
    %477 = vmatpush.bf16.msra.mxu0 0
    %478 = vmatpush.bf16.msra.mxu0 0
    %479 = vmatpush.bf16.msra.mxu0 0
    %480 = vmatpush.bf16.msra.mxu0 0
    %481 = vmatpush.bf16.msra.mxu0 0
    %482 = vmatpush.bf16.msra.mxu0 0
    %483 = vmatpush.bf16.msra.mxu0 0
    %484 = vmatpush.bf16.msra.mxu0 %v475
    %485 = vmatmul.bf16.gmra.mxu0 %v471
    %v486 = vpop.f32.mrf.mxu0
    %v487 = vadd.f32 0.0, %v486
    %v488 = vpop.f32.mrf.mxu0
    %489 = vdwg.mxu0
    %490 = vst.msk [vmem:[#allocation2] sm:$0xff] %vm173, %v487
    %491 = vrot.lane.b32.xlu0 %v167, 56
    %v492 = vpop.permute.xlu0 %491
    %v494 = vsel %vm173, %v461, 0
    %v497 = vsel %vm473, %v492, 0
    %499 = vmatpush.bf16.msra.mxu0 0
    %500 = vmatpush.bf16.msra.mxu0 0
    %501 = vmatpush.bf16.msra.mxu0 0
    %502 = vmatpush.bf16.msra.mxu0 0
    %503 = vmatpush.bf16.msra.mxu0 0
    %504 = vmatpush.bf16.msra.mxu0 0
    %505 = vmatpush.bf16.msra.mxu0 0
    %506 = vmatpush.bf16.msra.mxu0 %v497
    %507 = vmatmul.bf16.gmra.mxu0 %v494
    %v508 = vpop.f32.mrf.mxu0
    %v509 = vadd.f32 0.0, %v508
    %v510 = vpop.f32.mrf.mxu0
    %511 = vdwg.mxu0
    %513 = vrot.lane.b32.xlu0 %v509, 8
    %v514 = vpop.permute.xlu0 %513
    %vm516 = vcmask 130112
    %517 = vst.msk [vmem:[#allocation2] sm:$0xff] %vm516, %v514
    %518 = vrot.lane.b32.xlu0 %v167, 48
    %v519 = vpop.permute.xlu0 %518
    %v521 = vsel %vm173, %v462, 0
    %v524 = vsel %vm473, %v519, 0
    %526 = vmatpush.bf16.msra.mxu0 0
    %527 = vmatpush.bf16.msra.mxu0 0
    %528 = vmatpush.bf16.msra.mxu0 0
    %529 = vmatpush.bf16.msra.mxu0 0
    %530 = vmatpush.bf16.msra.mxu0 0
    %531 = vmatpush.bf16.msra.mxu0 0
    %532 = vmatpush.bf16.msra.mxu0 0
    %533 = vmatpush.bf16.msra.mxu0 %v524
    %534 = vmatmul.bf16.gmra.mxu0 %v521
    %v535 = vpop.f32.mrf.mxu0
    %v536 = vadd.f32 0.0, %v535
    %v537 = vpop.f32.mrf.mxu0
    %538 = vdwg.mxu0
    %540 = vrot.lane.b32.xlu0 %v536, 16
    %v541 = vpop.permute.xlu0 %540
    %vm543 = vcmask 195712
    %544 = vst.msk [vmem:[#allocation2] sm:$0xff] %vm543, %v541
    %545 = vrot.lane.b32.xlu0 %v167, 40
    %v546 = vpop.permute.xlu0 %545
    %v548 = vsel %vm173, %v463, 0
    %v551 = vsel %vm473, %v546, 0
    %553 = vmatpush.bf16.msra.mxu0 0
    %554 = vmatpush.bf16.msra.mxu0 0
    %555 = vmatpush.bf16.msra.mxu0 0
    %556 = vmatpush.bf16.msra.mxu0 0
    %557 = vmatpush.bf16.msra.mxu0 0
    %558 = vmatpush.bf16.msra.mxu0 0
    %559 = vmatpush.bf16.msra.mxu0 0
    %560 = vmatpush.bf16.msra.mxu0 %v551
    %561 = vmatmul.bf16.gmra.mxu0 %v548
    %v562 = vpop.f32.mrf.mxu0
    %v563 = vadd.f32 0.0, %v562
    %v564 = vpop.f32.mrf.mxu0
    %565 = vdwg.mxu0
    %567 = vrot.lane.b32.xlu0 %v563, 24
    %v568 = vpop.permute.xlu0 %567
    %vm570 = vcmask 261312
    %571 = vst.msk [vmem:[#allocation2] sm:$0xff] %vm570, %v568
    %572 = vrot.lane.b32.xlu0 %v262, 64
    %v573 = vpop.permute.xlu0 %572
    %v575 = vsel %vm173, %v464, 0
    %v578 = vsel %vm473, %v573, 0
    %580 = vmatpush.bf16.msra.mxu0 0
    %581 = vmatpush.bf16.msra.mxu0 0
    %582 = vmatpush.bf16.msra.mxu0 0
    %583 = vmatpush.bf16.msra.mxu0 0
    %584 = vmatpush.bf16.msra.mxu0 0
    %585 = vmatpush.bf16.msra.mxu0 0
    %586 = vmatpush.bf16.msra.mxu0 0
    %587 = vmatpush.bf16.msra.mxu0 %v578
    %588 = vmatmul.bf16.gmra.mxu0 %v575
    %v589 = vpop.f32.mrf.mxu0
    %v590 = vadd.f32 0.0, %v589
    %v591 = vpop.f32.mrf.mxu0
    %592 = vdwg.mxu0
    %593 = vst.msk [vmem:[#allocation2 + $0x8] sm:$0xff] %vm173, %v590
    %594 = vrot.lane.b32.xlu0 %v262, 56
    %v595 = vpop.permute.xlu0 %594
    %v597 = vsel %vm173, %v465, 0
    %v600 = vsel %vm473, %v595, 0
    %602 = vmatpush.bf16.msra.mxu0 0
    %603 = vmatpush.bf16.msra.mxu0 0
    %604 = vmatpush.bf16.msra.mxu0 0
    %605 = vmatpush.bf16.msra.mxu0 0
    %606 = vmatpush.bf16.msra.mxu0 0
    %607 = vmatpush.bf16.msra.mxu0 0
    %608 = vmatpush.bf16.msra.mxu0 0
    %609 = vmatpush.bf16.msra.mxu0 %v600
    %610 = vmatmul.bf16.gmra.mxu0 %v597
    %v611 = vpop.f32.mrf.mxu0
    %v612 = vadd.f32 0.0, %v611
    %v613 = vpop.f32.mrf.mxu0
    %614 = vdwg.mxu0
    %616 = vrot.lane.b32.xlu0 %v612, 8
    %v617 = vpop.permute.xlu0 %616
    %619 = vst.msk [vmem:[#allocation2 + $0x8] sm:$0xff] %vm516, %v617
    %620 = vrot.lane.b32.xlu0 %v262, 48
    %v621 = vpop.permute.xlu0 %620
    %v623 = vsel %vm173, %v466, 0
    %v626 = vsel %vm473, %v621, 0
    %628 = vmatpush.bf16.msra.mxu0 0
    %629 = vmatpush.bf16.msra.mxu0 0
    %630 = vmatpush.bf16.msra.mxu0 0
    %631 = vmatpush.bf16.msra.mxu0 0
    %632 = vmatpush.bf16.msra.mxu0 0
    %633 = vmatpush.bf16.msra.mxu0 0
    %634 = vmatpush.bf16.msra.mxu0 0
    %635 = vmatpush.bf16.msra.mxu0 %v626
    %636 = vmatmul.bf16.gmra.mxu0 %v623
    %v637 = vpop.f32.mrf.mxu0
    %v638 = vadd.f32 0.0, %v637
    %v639 = vpop.f32.mrf.mxu0
    %640 = vdwg.mxu0
    %642 = vrot.lane.b32.xlu0 %v638, 16
    %v643 = vpop.permute.xlu0 %642
    %645 = vst.msk [vmem:[#allocation2 + $0x8] sm:$0xff] %vm543, %v643
    %646 = vrot.lane.b32.xlu0 %v262, 40
    %v647 = vpop.permute.xlu0 %646
    %v649 = vsel %vm173, %v467, 0
    %v652 = vsel %vm473, %v647, 0
    %654 = vmatpush.bf16.msra.mxu0 0
    %655 = vmatpush.bf16.msra.mxu0 0
    %656 = vmatpush.bf16.msra.mxu0 0
    %657 = vmatpush.bf16.msra.mxu0 0
    %658 = vmatpush.bf16.msra.mxu0 0
    %659 = vmatpush.bf16.msra.mxu0 0
    %660 = vmatpush.bf16.msra.mxu0 0
    %661 = vmatpush.bf16.msra.mxu0 %v652
    %662 = vmatmul.bf16.gmra.mxu0 %v649
    %v663 = vpop.f32.mrf.mxu0
    %v664 = vadd.f32 0.0, %v663
    %v665 = vpop.f32.mrf.mxu0
    %666 = vdwg.mxu0
    %668 = vrot.lane.b32.xlu0 %v664, 24
    %v669 = vpop.permute.xlu0 %668
    %671 = vst.msk [vmem:[#allocation2 + $0x8] sm:$0xff] %vm570, %v669
    %v672 = vld [vmem:[#allocation2] sm:$0xff]
    %v673 = vld [vmem:[#allocation2 + $0x8] sm:$0xff]
    %v674 = vpack.c.bf16 %v673, %v672
    %v679 = vunpack.c.l.b16 %v47
    %v680 = vunpack.c.l.b16 %v48
    %v681 = vunpack.c.l.b16 %v49
    %v682 = vunpack.c.l.b16 %v50
    %v683 = vpack.c.b16 %v680, %v679
    %v684 = vpack.c.b16 %v682, %v681
    %v688 = vsel %vm65, %v674, 0
    %690 = vmatpush.bf16.msra.mxu0 0
    %691 = vmatpush.bf16.msra.mxu0 0
    %692 = vmatpush.bf16.msra.mxu0 0
    %693 = vmatpush.bf16.msra.mxu0 0
    %694 = vmatpush.bf16.msra.mxu0 0
    %695 = vmatpush.bf16.msra.mxu0 0
    %696 = vmatpush.bf16.msra.mxu0 %v684
    %697 = vmatpush.bf16.msra.mxu0 %v683
    %698 = vmatmul.bf16.gmra.mxu0 %v688
    %v699 = vpop.f32.mrf.mxu0
    %v700 = vadd.f32 0.0, %v699
    %v701 = vpop.f32.mrf.mxu0
    %v702 = vadd.f32 0.0, %v701
    %703 = vdwg.mxu0
    %v704 = vadd.f32 %v63, %v700
    %v705 = vadd.f32 %v64, %v702
    %v706 = vperm.slane %v38, 0
    %v707 = vadd.f32 %v704, %v706
    %v708 = vadd.f32 %v705, %v706
    %v709 = vsel %vm65, %v707, 0.0
    %710 = vadd.xlane.f32.xlu0 %v709
    %v711 = vpop.xlane.xlu0 %710
    %v712 = vsel %vm65, %v708, 0.0
    %713 = vadd.xlane.f32.xlu0 %v712
    %v714 = vpop.xlane.xlu0 %713
    %v715 = vmul.f32 %v711, %v78
    %v716 = vmul.f32 %v714, %v78
    %v717 = vsub.f32 %v707, %v715
    %v718 = vsub.f32 %v708, %v716
    %v719 = vmul.f32 %v717, %v717
    %v720 = vmul.f32 %v718, %v718
    %v721 = vsel %vm65, %v719, 0.0
    %722 = vadd.xlane.f32.xlu0 %v721
    %v723 = vpop.xlane.xlu0 %722
    %v724 = vsel %vm65, %v720, 0.0
    %725 = vadd.xlane.f32.xlu0 %v724
    %v726 = vpop.xlane.xlu0 %725
    %v727 = vmul.f32 %v723, %v97
    %v728 = vmul.f32 %v726, %v97
    %v729 = vrsqrt.pop %v727
    %v730 = vmul.f32 %v729, %v727
    %v731 = vmul.f32 %v730, %v729
    %v732 = vmul.f32 0.5, %v731
    %v733 = vsub.f32 1.5, %v732
    %v734 = vmul.f32 %v729, %v733
    %v735 = vmul.f32 %v727, %v734
    %vm736 = vcmp.eq.f32.partialorder %v727, inf
    %v737 = vsel %vm736, %v727, %v735
    %vm738 = vcmp.eq.f32.partialorder %v727, 0.0
    %v739 = vand.u32 %v727, 2147483648
    %v740 = vsel %vm738, %v739, %v737
    %v741 = vrsqrt.pop %v728
    %v742 = vmul.f32 %v741, %v728
    %v743 = vmul.f32 %v742, %v741
    %v744 = vmul.f32 0.5, %v743
    %v745 = vsub.f32 1.5, %v744
    %v746 = vmul.f32 %v741, %v745
    %v747 = vmul.f32 %v728, %v746
    %vm748 = vcmp.eq.f32.partialorder %v728, inf
    %v749 = vsel %vm748, %v728, %v747
    %vm750 = vcmp.eq.f32.partialorder %v728, 0.0
    %v751 = vand.u32 %v728, 2147483648
    %v752 = vsel %vm750, %v751, %v749
    %v753 = vadd.f32 %v740, 1e-06
    %v754 = vadd.f32 %v752, 1e-06
    %v755 = vrcp.pop %v753
    %v756 = vrcp.pop %v754
    %v757 = vperm.slane %v39, 0
    %v758 = vmul.f32 %v757, %v717
    %v759 = vmul.f32 %v757, %v718
    %v760 = vmul.f32 %v758, %v755
    %v761 = vmul.f32 %v759, %v756
    %v762 = vperm.slane %v40, 0
    %v763 = vadd.f32 %v760, %v762
    %v764 = vadd.f32 %v761, %v762
    %v765 = vpack.c.bf16 %v764, %v763
    %v766 = vperm.slane %v41, 0
    %v771 = vunpack.c.l.b16 %v51
    %v772 = vunpack.c.l.b16 %v52
    %v773 = vunpack.c.l.b16 %v53
    %v774 = vunpack.c.l.b16 %v54
    %v775 = vpack.c.b16 %v772, %v771
    %v776 = vpack.c.b16 %v774, %v773
    %v780 = vsel %vm65, %v765, 0
    %782 = vmatpush.bf16.msra.mxu0 0
    %783 = vmatpush.bf16.msra.mxu0 0
    %784 = vmatpush.bf16.msra.mxu0 0
    %785 = vmatpush.bf16.msra.mxu0 0
    %786 = vmatpush.bf16.msra.mxu0 0
    %787 = vmatpush.bf16.msra.mxu0 0
    %788 = vmatpush.bf16.msra.mxu0 %v776
    %789 = vmatpush.bf16.msra.mxu0 %v775
    %790 = vmatmul.bf16.gmra.mxu0 %v780
    %v791 = vpop.f32.mrf.mxu0
    %v792 = vadd.f32 %v766, %v791
    %v793 = vpop.f32.mrf.mxu0
    %v794 = vadd.f32 %v766, %v793
    %795 = vdwg.mxu0
    %v796 = vmax.f32 %v792, 0.0
    %v797 = vmax.f32 %v794, 0.0
    %v798 = vpack.c.bf16 %v797, %v796
    %v799 = vperm.slane %v42, 0
    %v808 = vunpack.c.l.b16 %v55
    %v809 = vunpack.c.l.b16 %v56
    %v810 = vunpack.c.l.b16 %v57
    %v811 = vunpack.c.l.b16 %v58
    %v812 = vunpack.c.l.b16 %v59
    %v813 = vunpack.c.l.b16 %v60
    %v814 = vunpack.c.l.b16 %v61
    %v815 = vunpack.c.l.b16 %v62
    %v816 = vpack.c.b16 %v809, %v808
    %v817 = vpack.c.b16 %v811, %v810
    %v818 = vpack.c.b16 %v813, %v812
    %v819 = vpack.c.b16 %v815, %v814
    %vm824 = vcmask 523264
    %v826 = vsel %vm824, %v798, 0
    %828 = vmatpush.bf16.msra.mxu0 0
    %829 = vmatpush.bf16.msra.mxu0 0
    %830 = vmatpush.bf16.msra.mxu0 0
    %831 = vmatpush.bf16.msra.mxu0 0
    %832 = vmatpush.bf16.msra.mxu0 %v819
    %833 = vmatpush.bf16.msra.mxu0 %v818
    %834 = vmatpush.bf16.msra.mxu0 %v817
    %835 = vmatpush.bf16.msra.mxu0 %v816
    %836 = vmatmul.bf16.gmra.mxu0 %v826
    %v837 = vpop.f32.mrf.mxu0
    %v838 = vadd.f32 %v799, %v837
    %v839 = vpop.f32.mrf.mxu0
    %v840 = vadd.f32 %v799, %v839
    %841 = vdwg.mxu0
    %v842 = vadd.f32 %v707, %v838
    %v843 = vadd.f32 %v708, %v840
    %844 = vst.msk [vmem:[#allocation6] sm:$0xff] %vm65, %v842
    %845 = vst.msk [vmem:[#allocation6 + $0x8] sm:$0xff] %vm65, %v843
    // Predicated region
    $region22: #{tpu_custom_call.1} parent=1 // pred_check
      _
    $region23: #{tpu_custom_call.1} parent=1 // pred_check_branch
      %847 = sbr.rel (0) target = $region25
    $region24: #{tpu_custom_call.1} parent=1 // pred_region
      %849 = vsyncadd [#allocation5], 0
      %s850 = sshll.u32 [#allocation6], 4
      %s851 = int_to_ptr.vmem [resolvable:$true] %s850
      %s852 = sshll.u32 %s4, 4
      %s853 = int_to_ptr.hbm [resolvable:$true] %s852
      %858 = dma.vmem_to_hbm [thread:$0]  %s851, 256, %s853, [#allocation5], 128, 128, 8
    $region25: #{tpu_custom_call.1} parent=1 // pred_fallthru
      _
    // Predicated region
    $region26: #{tpu_custom_call.1} parent=1 // pred_check
      _
    $region27: #{tpu_custom_call.1} parent=1 // pred_check_branch
      %860 = sbr.rel (0) target = $region29
    $region28: #{tpu_custom_call.1} parent=1 // pred_region
      %862 = dma.done [#allocation5], 256
    $region29: #{tpu_custom_call.1} parent=1 // pred_fallthru
      _
    %863 = vsyncpa [#allocation4], 1
    %864 = vsyncpa [#allocation5], 1

</llo_original>
